<compile_context>
chip_gen: v7x
topology: tpu7x:2x2x1
jax: 0.10.0
libtpu: 0.0.40
codegen_flags: <defaults>
</compile_context>

<pallas_src>
import math

import jax
import jax.numpy as jnp
from jax.experimental import pallas as pl
from jax.experimental.pallas import tpu as pltpu

K_SCALE = 2.0       # k_scale default in draw_samples
LBD_SCALE = 2.0     # lbd_scale default in draw_samples
_LOG_2PI = 1.8378770664093453
_LOG_K_SCALE = math.log(K_SCALE)
_LOG_LBD_SCALE = math.log(LBD_SCALE)

_N_CORES = 2                      # megacore split (2 TCs on v7x)
_MAX_TILE = 256                   # review: TS > 256 only inflates VMEM traffic
_VMEM_PER_INTERMEDIATE = 2 << 20  # keep each (TS, D) f32 intermediate <= 2 MiB


def _weibull_elbo_kernel(lbd_ref, tb_ref, y_ref, out_ref, acc_ref, logy_ref):
    s = pl.program_id(1)

    @pl.when(s == 0)
    def _init():
        acc_ref[...] = jnp.zeros_like(acc_ref)
        # log(y) computed once per core partition; y's block index never
        # changes so Pallas keeps it resident (no per-step re-DMA).
        logy_ref[...] = jnp.log(y_ref[...])

    # Hot O(S*D) loop: row_s = sum_d exp(lbd_s * log(y_d) + tb_s)
    # (2 VPU ops + 1 EUP exp per element; no mask, no per-element bias;
    #  lane reduction uses idle XLU / spare VALU slots).
    row = jnp.sum(jnp.exp(lbd_ref[...] * logy_ref[...] + tb_ref[...]),
                  axis=1, keepdims=True)               # (TS, 1)
    acc_ref[...] += row

    @pl.when(s == pl.num_programs(1) - 1)
    def _finalize():
        out_ref[...] = jnp.sum(acc_ref[...]) + jnp.zeros_like(out_ref)


def weibull_elbo(param, z_k, z_lbd, y, *, max_tile=_MAX_TILE):
    """param: (4,) f32; z_k/z_lbd: (S,1) f32 N(0,1) draws; y: (D,) f32 (>0)."""
    f32 = jnp.float32
    S = int(z_k.shape[0])
    D = int(y.shape[-1])

    # ---- lane-dense D padding (padded lanes hold y = 1.0 -> log y = 0) ----
    D_pad = max(128, ((D + 127) // 128) * 128)
    n_pad_lanes = D_pad - D

    # ---- sample tiling: multiple of 8, VMEM-capped, balanced across tiles
    #      and cores (no pure-padding tiles; P=1 for small S on v7x) ----
    vmem_cap = max(8, (_VMEM_PER_INTERMEDIATE // (D_pad * 4)) // 8 * 8)
    tile_cap = max(8, min(max_tile, vmem_cap))
    P = _N_CORES if S > tile_cap else 1
    per_core = -(-S // P)
    NS = -(-per_core // tile_cap)
    TS = max(8, ((-(-per_core // NS) + 7) // 8) * 8)
    S_pad = P * NS * TS

    # ---- per-sample precompute (O(S)+O(D) glue, lane-dense under XLA) ----
    zk = z_k.reshape(-1).astype(f32)
    zl = z_lbd.reshape(-1).astype(f32)
    param = param.astype(f32)
    mu_k, lv_k, mu_l, lv_l = param[0], param[1], param[2], param[3]
    sd_k = jnp.exp(0.5 * lv_k)
    sd_l = jnp.exp(0.5 * lv_l)
    unc_k = zk * sd_k + mu_k                      # reparameterized draws
    unc_l = zl * sd_l + mu_l
    log_k = _LOG_K_SCALE + jax.nn.log_sigmoid(unc_k)    # log(sigmoid * 2)
    log_lbd = _LOG_LBD_SCALE + jax.nn.log_sigmoid(unc_l)
    lbd = LBD_SCALE * jax.nn.sigmoid(unc_l)
    # Normal(mu, sd).log_prob(unc) for both params (z is the standard draw)
    pen = -0.5 * (zk * zk + zl * zl) - 0.5 * (lv_k + lv_l) - _LOG_2PI
    tb = -lbd * log_k                              # per-sample broadcast bias
    logy = jnp.log(y.reshape(-1).astype(f32))
    sum_logy = jnp.sum(logy)
    # Per-sample bias cb_s = everything of (pen_s - lls_s) except
    # sum_d exp(t_{s,d}), minus the analytic padded-lane term n_pad*k^-lbd.
    cb = (pen
          - float(D) * (log_lbd - log_k)
          - (lbd - 1.0) * (sum_logy - float(D) * log_k)
          - float(n_pad_lanes) * jnp.exp(tb))

    # ---- pad kernel inputs (padded samples: lbd=0, tb=0 -> row = D_pad) ----
    lbd_p = jnp.zeros((S_pad,), f32).at[:S].set(lbd).reshape(S_pad, 1)
    tb_p = jnp.zeros((S_pad,), f32).at[:S].set(tb).reshape(S_pad, 1)
    y_p = jnp.ones((1, D_pad), f32).at[0, :D].set(y.reshape(-1).astype(f32))

    sample_map = lambda p, s: (p * NS + s, 0)
    grid_spec = pltpu.PrefetchScalarGridSpec(
        num_scalar_prefetch=0,
        grid=(P, NS),
        in_specs=[
            pl.BlockSpec((TS, 1), sample_map),              # lbd column
            pl.BlockSpec((TS, 1), sample_map),              # tb column
            pl.BlockSpec((1, D_pad), lambda p, s: (0, 0)),  # y (resident)
        ],
        out_specs=pl.BlockSpec((1, 8, 128), lambda p, s: (p, 0, 0)),
        scratch_shapes=[
            pltpu.VMEM((TS, 1), jnp.float32),      # per-sample exp-sum acc
            pltpu.VMEM((1, D_pad), jnp.float32),   # cached log(y)
        ],
    )

    cost = pl.CostEstimate(
        flops=4 * S_pad * D_pad,
        transcendentals=S_pad * D_pad + P * D_pad,
        bytes_accessed=4 * (2 * S_pad + D_pad + P * 8 * 128),
    )

    partials = pl.pallas_call(
        _weibull_elbo_kernel,
        out_shape=jax.ShapeDtypeStruct((P, 8, 128), jnp.float32),
        grid_spec=grid_spec,
        compiler_params=pltpu.CompilerParams(
            dimension_semantics=("parallel", "arbitrary"),
            vmem_limit_bytes=32 * 1024 * 1024,
        ),
        cost_estimate=cost,
    )(lbd_p, tb_p, y_p)

    # Kernel returns sum_s sum_d exp(t); each padded sample contributes
    # exactly D_pad; the rest of (pen - lls) lives in cb (real samples only).
    exp_total = jnp.sum(partials[:, 0, 0]) - float(D_pad) * (S_pad - S)
    return (jnp.sum(cb) + exp_total) / S


def _reference(param, z_k, z_lbd, y):
    """Pure-JAX mirror of the PyTorch forward (same reparam noise)."""
    mu_k, lv_k, mu_l, lv_l = param
    sd_k = jnp.exp(0.5 * lv_k)
    sd_l = jnp.exp(0.5 * lv_l)
    unc_k = z_k * sd_k + mu_k
    unc_l = z_lbd * sd_l + mu_l
    k = jax.nn.sigmoid(unc_k) * K_SCALE
    lbd = jax.nn.sigmoid(unc_l) * LBD_SCALE
    lp = (jnp.log(lbd) - jnp.log(k)
          + (lbd - 1.0) * (jnp.log(y)[None, :] - jnp.log(k))
          - (y[None, :] / k) ** lbd)
    lls_mean = jnp.mean(jnp.sum(lp, axis=-1))
    pen = (-0.5 * z_k ** 2 - jnp.log(sd_k) - 0.5 * _LOG_2PI
           - 0.5 * z_lbd ** 2 - jnp.log(sd_l) - 0.5 * _LOG_2PI)
    return -lls_mean + jnp.mean(pen)


if __name__ == "__main__":
    key = jax.random.PRNGKey(0)

    def run_case(param, S, D, seed, max_tile=_MAX_TILE):
        k1, k2, k3 = jax.random.split(jax.random.PRNGKey(seed), 3)
        z_k = jax.random.normal(k1, (S, 1), dtype=jnp.float32)
        z_lbd = jax.random.normal(k2, (S, 1), dtype=jnp.float32)
        y = jax.random.uniform(k3, (D,), dtype=jnp.float32, minval=0.1, maxval=2.0)
        out = jax.block_until_ready(
            weibull_elbo(param, z_k, z_lbd, y, max_tile=max_tile))
        ref = _reference(param, z_k, z_lbd, y)
        assert jnp.allclose(out, ref, rtol=1e-4, atol=1e-3), (out, ref)

    # Case 1: module defaults (zero-init param), small lane-aligned problem,
    #         P=1 single-tile path.
    run_case(jnp.zeros((4,), jnp.float32), S=8, D=128, seed=0)
    # Case 2: non-zero params, D not a multiple of 128 (padded-lane path).
    run_case(jnp.array([0.3, -0.5, -0.2, 0.4], jnp.float32), S=96, D=200, seed=1)
    # Case 3: multiple sample tiles per core, two-core split, padded samples
    #         (accumulator + analytic padded-sample correction path).
    run_case(jnp.array([-0.1, 0.2, 0.4, -0.3], jnp.float32), S=520, D=200,
             seed=2, max_tile=64)

    print("KERNEL_OK")
</pallas_src>

<mosaic_0001>
module attributes {stable_mosaic.version = 11 : i64} {
  func.func @_weibull_elbo_kernel(%arg0: i32, %arg1: i32, %arg2: memref<8x1xf32, #tpu.memory_space<vmem>>, %arg3: memref<8x1xf32, #tpu.memory_space<vmem>>, %arg4: memref<1x128xf32, #tpu.memory_space<vmem>>, %arg5: memref<1x8x128xf32, #tpu.memory_space<vmem>>, %arg6: memref<8x1xf32, #tpu.memory_space<vmem>>, %arg7: memref<1x128xf32, #tpu.memory_space<vmem>>) attributes {dimension_semantics = [#tpu.dimension_semantics<parallel>, #tpu.dimension_semantics<arbitrary>], iteration_bounds = array<i64: 1, 1>, scalar_prefetch = 0 : i64, scratch_operands = 2 : i64, tpu.core_type = #tpu.core_type<tc>, window_params = [{transform_indices = @transform_0, window_bounds = array<i64: 8, 1>}, {transform_indices = @transform_1, window_bounds = array<i64: 8, 1>}, {pipeline_mode = #tpu.pipeline_mode<synchronous>, transform_indices = @transform_2, window_bounds = array<i64: 1, 128>}, {transform_indices = @transform_3, window_bounds = array<i64: 1, 8, 128>}]} {
    %c0_i32 = arith.constant 0 : i32
    %0 = arith.cmpi eq, %arg1, %c0_i32 : i32
    %1 = arith.extui %0 : i1 to i32
    %c0_i32_0 = arith.constant 0 : i32
    %2 = arith.cmpi ne, %1, %c0_i32_0 : i32
    scf.if %2 {
      %cst_12 = arith.constant 0.000000e+00 : f32
      %20 = vector.broadcast %cst_12 : f32 to vector<8x1xf32>
      %c0_13 = arith.constant 0 : index
      %c0_14 = arith.constant 0 : index
      %21 = vector.load %arg6[%c0_13, %c0_14] : memref<8x1xf32, #tpu.memory_space<vmem>>, vector<8x1xf32>
      tpu.vector_store %arg6[%c0_13, %c0_14], %20 {strides = array<i32>} : memref<8x1xf32, #tpu.memory_space<vmem>>, vector<8x1xf32>,
      %c0_15 = arith.constant 0 : index
      %c0_16 = arith.constant 0 : index
      %22 = vector.load %arg4[%c0_15, %c0_16] : memref<1x128xf32, #tpu.memory_space<vmem>>, vector<1x128xf32>
      %23 = math.log %22 : vector<1x128xf32>
      %c0_17 = arith.constant 0 : index
      %c0_18 = arith.constant 0 : index
      %24 = vector.load %arg7[%c0_17, %c0_18] : memref<1x128xf32, #tpu.memory_space<vmem>>, vector<1x128xf32>
      tpu.vector_store %arg7[%c0_17, %c0_18], %23 {strides = array<i32>} : memref<1x128xf32, #tpu.memory_space<vmem>>, vector<1x128xf32>,
    } else {
    }
    %c0 = arith.constant 0 : index
    %c0_1 = arith.constant 0 : index
    %3 = vector.load %arg2[%c0, %c0_1] : memref<8x1xf32, #tpu.memory_space<vmem>>, vector<8x1xf32>
    %c0_2 = arith.constant 0 : index
    %c0_3 = arith.constant 0 : index
    %4 = vector.load %arg7[%c0_2, %c0_3] : memref<1x128xf32, #tpu.memory_space<vmem>>, vector<1x128xf32>
    %5 = vector.broadcast %3 : vector<8x1xf32> to vector<8x128xf32>
    %6 = vector.broadcast %4 : vector<1x128xf32> to vector<8x128xf32>
    %7 = arith.mulf %5, %6 : vector<8x128xf32>
    %c0_4 = arith.constant 0 : index
    %c0_5 = arith.constant 0 : index
    %8 = vector.load %arg3[%c0_4, %c0_5] : memref<8x1xf32, #tpu.memory_space<vmem>>, vector<8x1xf32>
    %9 = vector.broadcast %8 : vector<8x1xf32> to vector<8x128xf32>
    %10 = arith.addf %7, %9 : vector<8x128xf32>
    %11 = math.exp %10 : vector<8x128xf32>
    %cst = arith.constant dense<0.000000e+00> : vector<8xf32>
    %12 = vector.multi_reduction <add>, %11, %cst [1] : vector<8x128xf32> to vector<8xf32>
    %13 = vector.shape_cast %12 : vector<8xf32> to vector<8x1xf32>
    %c0_6 = arith.constant 0 : index
    %c0_7 = arith.constant 0 : index
    %14 = vector.load %arg6[%c0_6, %c0_7] : memref<8x1xf32, #tpu.memory_space<vmem>>, vector<8x1xf32>
    %15 = arith.addf %14, %13 : vector<8x1xf32>
    %c0_8 = arith.constant 0 : index
    %c0_9 = arith.constant 0 : index
    %16 = vector.load %arg6[%c0_8, %c0_9] : memref<8x1xf32, #tpu.memory_space<vmem>>, vector<8x1xf32>
    tpu.vector_store %arg6[%c0_8, %c0_9], %15 {strides = array<i32>} : memref<8x1xf32, #tpu.memory_space<vmem>>, vector<8x1xf32>,
    %c0_i32_10 = arith.constant 0 : i32
    %17 = arith.cmpi eq, %arg1, %c0_i32_10 : i32
    %18 = arith.extui %17 : i1 to i32
    %c0_i32_11 = arith.constant 0 : i32
    %19 = arith.cmpi ne, %18, %c0_i32_11 : i32
    scf.if %19 {
      %c0_12 = arith.constant 0 : index
      %c0_13 = arith.constant 0 : index
      %20 = vector.load %arg6[%c0_12, %c0_13] : memref<8x1xf32, #tpu.memory_space<vmem>>, vector<8x1xf32>
      %21 = vector.shape_cast %20 : vector<8x1xf32> to vector<1x8x1xf32>
      %cst_14 = arith.constant dense<0.000000e+00> : vector<1xf32>
      %22 = vector.multi_reduction <add>, %21, %cst_14 [1, 2] : vector<1x8x1xf32> to vector<1xf32>
      %23 = vector.shape_cast %22 : vector<1xf32> to vector<1x1x1xf32>
      %24 = vector.extract %23[0, 0, 0] : f32 from vector<1x1x1xf32>
      %cst_15 = arith.constant 0.000000e+00 : f32
      %25 = vector.broadcast %cst_15 : f32 to vector<1x8x128xf32>
      %26 = vector.broadcast %24 : f32 to vector<1x8x128xf32>
      %27 = arith.addf %26, %25 : vector<1x8x128xf32>
      %c0_16 = arith.constant 0 : index
      %c0_17 = arith.constant 0 : index
      %c0_18 = arith.constant 0 : index
      %28 = vector.load %arg5[%c0_16, %c0_17, %c0_18] : memref<1x8x128xf32, #tpu.memory_space<vmem>>, vector<1x8x128xf32>
      tpu.vector_store %arg5[%c0_16, %c0_17, %c0_18], %27 {strides = array<i32>} : memref<1x8x128xf32, #tpu.memory_space<vmem>>, vector<1x8x128xf32>,
    } else {
    }
    return
  }
  func.func @transform_0(%arg0: i32, %arg1: i32) -> (i32, i32) {
    %c1_i32 = arith.constant 1 : i32
    %0 = arith.muli %arg0, %c1_i32 : i32
    %1 = arith.addi %0, %arg1 : i32
    %c0_i32 = arith.constant 0 : i32
    %c0_i32_0 = arith.constant 0 : i32
    return %1, %c0_i32 : i32, i32
  }
  func.func @transform_1(%arg0: i32, %arg1: i32) -> (i32, i32) {
    %c1_i32 = arith.constant 1 : i32
    %0 = arith.muli %arg0, %c1_i32 : i32
    %1 = arith.addi %0, %arg1 : i32
    %c0_i32 = arith.constant 0 : i32
    %c0_i32_0 = arith.constant 0 : i32
    return %1, %c0_i32 : i32, i32
  }
  func.func @transform_2(%arg0: i32, %arg1: i32) -> (i32, i32) {
    %c0_i32 = arith.constant 0 : i32
    %c0_i32_0 = arith.constant 0 : i32
    %c0_i32_1 = arith.constant 0 : i32
    return %c0_i32, %c0_i32_0 : i32, i32
  }
  func.func @transform_3(%arg0: i32, %arg1: i32) -> (i32, i32, i32) {
    %c0_i32 = arith.constant 0 : i32
    %c0_i32_0 = arith.constant 0 : i32
    %c0_i32_1 = arith.constant 0 : i32
    return %arg0, %c0_i32, %c0_i32_0 : i32, i32, i32
  }
}

</mosaic_0001>

<llo_original>
// kernel: tpu_custom_call.1
$region0: #{tpu_custom_call.1}
  #allocation0 [shape = 'u32[]', space=smem, size = 0x4, offset = 0x4, fixed_abs, tag = 'smem constant byte address 0x4 - core index']
  #allocation1 [shape = 'u32[144,128]{1,0:T(1,128)}', space=vmem, size = 0x12000, scoped, tag = 'internal scratch']
  #allocation2 [shape = 'f32[8,1]{1,0:T(8,128)}', space=vmem, size = 0x1000, scoped, tag = 'scratch operand']
  #allocation3 [shape = 'f32[1,128]{1,0:T(1,128)}', space=vmem, size = 0x200, scoped, tag = 'scratch operand']
  %s0 = inlined_call_operand.vmem [shape: f32[8,1], index: 0, kind: input, shape index: {}]
  %s1 = inlined_call_operand.vmem [shape: f32[8,1], index: 1, kind: input, shape index: {}]
  %s2 = inlined_call_operand.vmem [shape: f32[1,128], index: 2, kind: input, shape index: {}]
  %s3 = inlined_call_operand.hbm [shape: f32[1,8,128], index: 3, kind: output, shape index: {}]
  %s4 = sld [smem:[#allocation0]]
  $region30: #{tpu_custom_call.1} parent=0
    _
  %s6 = ssub.s32 1, %s4
  %s7 = scalar_select 0, %s6, %s4
  $region1: #{tpu_custom_call.1} parent=0
    #allocation4 [shape = 'u8[4096]{0}', space=vmem, size = 0x1000, scoped, tag = 'output window, operand 0, single buffered']
    #allocation5 [shape = 's32[1]{0}', space=sflag, size = 0x4, scoped, tag = 'scoped memory for tpu_custom_call.1']
    %8 = vsyncpa [#allocation5], 0
    // Predicated region
    $region2: #{tpu_custom_call.1} parent=1 // pred_check
      _
    $region3: #{tpu_custom_call.1} parent=1 // pred_check_branch
      %10 = sbr.rel (0) target = $region5
    $region4: #{tpu_custom_call.1} parent=1 // pred_region
      %s11 = sadd.s32 0, 0
      %p12 = scmp.lt.s32.totalorder %s11, 0
      %s13 = scalar_select %p12, %s11, 0
      %s14 = smul.addr %s13, 8
      %s15 = scalar_lea.vmem %s0, %s14
      %s16 = sadd.s32 0, 0
    $region5: #{tpu_custom_call.1} parent=1 // pred_fallthru
      _
    // Predicated region
    $region6: #{tpu_custom_call.1} parent=1 // pred_check
      _
    $region7: #{tpu_custom_call.1} parent=1 // pred_check_branch
      %18 = sbr.rel (0) target = $region9
    $region8: #{tpu_custom_call.1} parent=1 // pred_region
      %s19 = sadd.s32 0, 0
      %p20 = scmp.lt.s32.totalorder %s19, 0
      %s21 = scalar_select %p20, %s19, 0
      %s22 = smul.addr %s21, 8
      %s23 = scalar_lea.vmem %s1, %s22
      %s24 = sadd.s32 0, 0
    $region9: #{tpu_custom_call.1} parent=1 // pred_fallthru
      _
    // Predicated region
    $region10: #{tpu_custom_call.1} parent=1 // pred_check
      _
    $region11: #{tpu_custom_call.1} parent=1 // pred_check_branch
      %26 = sbr.rel (0) target = $region13
    $region12: #{tpu_custom_call.1} parent=1 // pred_region
      _
    $region13: #{tpu_custom_call.1} parent=1 // pred_fallthru
      _
    %s27 = sadd.s32 0, 0
    %p28 = scmp.lt.s32.totalorder %s27, 0
    %s29 = scalar_select %p28, %s27, 0
    %s30 = smul.addr %s29, 8
    %s31 = scalar_lea.vmem %s0, %s30
    %s32 = sadd.s32 0, 0
    %p33 = scmp.lt.s32.totalorder %s32, 0
    %s34 = scalar_select %p33, %s32, 0
    %s35 = smul.addr %s34, 8
    %s36 = scalar_lea.vmem %s1, %s35
    %s37 = sadd.s32 0, 0
    %p38 = scmp.lt.s32.totalorder %s37, 0
    %s39 = scalar_select %p38, %s37, 0
    %s40 = smul.addr %s39, 8
    %s41 = scalar_lea.vmem %s0, %s40
    %s42 = sadd.s32 0, 0
    %s43 = sadd.s32 0, 0
    %p44 = scmp.lt.s32.totalorder %s43, 0
    %s45 = scalar_select %p44, %s43, 0
    %s46 = smul.addr %s45, 8
    %s47 = scalar_lea.vmem %s1, %s46
    %s48 = sadd.s32 0, 0
    %p49 = scmp.eq.s32.totalorder 0, 0
    // Predicated region
    $region14: #{tpu_custom_call.1} parent=1 // pred_check
      %p50 = pneg %p49
    $region15: #{tpu_custom_call.1} parent=1 // pred_check_branch
      %52 = sbr.rel (%p50) target = $region17
    $region16: #{tpu_custom_call.1} parent=1 // pred_region
      %vm53 = vcmask 7168
      %54 = vst.msk [vmem:[#allocation2] sm:$0xff] %vm53, 0.0
      %v55 = vld [vmem:[%s2] sm:$0x1]
      %v56 = vlog2.pop %v55
      %v57 = vmul.f32 %v56, 0.6931472
      %58 = vst [vmem:[#allocation3] sm:$0x1] %v57
    $region17: #{tpu_custom_call.1} parent=1 // pred_fallthru
      _
    %v59 = vld [vmem:[%s41] sm:$0xff]
    %v60 = vld [vmem:[#allocation3] sm:$0x1]
    %62 = vset.pattern.permute.xlu0 0
    %63 = vperm.xlu0 %62, %v59
    %v64 = vpop.permute.xlu0 %63
    %v67 = vlaneseq
    %v68 = vshrl.u32 %v67, 7
    %v69 = vsub.s32 0, %v68
    %v70 = vrot.slane %v60, %v69
    %v72 = vmul.f32 %v64, %v70
    %v73 = vld [vmem:[%s47] sm:$0xff]
    %75 = vset.pattern.permute.xlu0 0
    %76 = vperm.xlu0 %75, %v73
    %v77 = vpop.permute.xlu0 %76
    %v79 = vadd.f32 %v72, %v77
    %v80 = vmul.f32 %v79, 1.442695
    %v81 = vpow.pop %v80
    %82 = vadd.xlane.f32.xlu0 %v81
    %v83 = vpop.xlane.xlu0 %82
    %v84 = vld [vmem:[#allocation2] sm:$0xff]
    %v85 = vadd.f32 %v84, %v83
    %vm86 = vcmask 7168
    %87 = vst.msk [vmem:[#allocation2] sm:$0xff] %vm86, %v85
    // Predicated region
    $region18: #{tpu_custom_call.1} parent=1 // pred_check
      %p88 = pneg %p49
    $region19: #{tpu_custom_call.1} parent=1 // pred_check_branch
      %90 = sbr.rel (%p88) target = $region21
    $region20: #{tpu_custom_call.1} parent=1 // pred_region
      %v91 = vld [vmem:[#allocation2] sm:$0xff]
      %v92 = vsel %vm86, %v91, 0.0
      %93 = vadd.xlane.f32.xlu0 %v92
      %v94 = vpop.xlane.xlu0 %93
      %v95 = vrot.slane %v94, 4
      %v96 = vadd.f32 %v94, %v95
      %v97 = vrot.slane %v96, 2
      %v98 = vadd.f32 %v96, %v97
      %v99 = vrot.slane %v98, 1
      %v100 = vadd.f32 %v98, %v99
      %s101 = vtos %v100
      %v102 = vstv %s101
      %v103 = vadd.f32 %v102, 0.0
      %104 = vst [vmem:[#allocation4] sm:$0xff] %v103
    $region21: #{tpu_custom_call.1} parent=1 // pred_fallthru
      _
    // Predicated region
    $region22: #{tpu_custom_call.1} parent=1 // pred_check
      _
    $region23: #{tpu_custom_call.1} parent=1 // pred_check_branch
      %106 = sbr.rel (0) target = $region25
    $region24: #{tpu_custom_call.1} parent=1 // pred_region
      %s108 = ssub.s32 128, 128
      %109 = vsyncadd [#allocation5], %s108
      %s111 = sshll.u32 [#allocation4], 4
      %s112 = int_to_ptr.vmem [resolvable:$true] %s111
      %114 = dma.vmem_to_hbm [thread:$0]  %s112, 128, %s3, [#allocation5]
    $region25: #{tpu_custom_call.1} parent=1 // pred_fallthru
      _
    // Predicated region
    $region26: #{tpu_custom_call.1} parent=1 // pred_check
      _
    $region27: #{tpu_custom_call.1} parent=1 // pred_check_branch
      %116 = sbr.rel (0) target = $region29
    $region28: #{tpu_custom_call.1} parent=1 // pred_region
      %117 = dma.done [#allocation5], 128
    $region29: #{tpu_custom_call.1} parent=1 // pred_fallthru
      _
    %118 = vsyncpa [#allocation5], 1

</llo_original>
